<compile_context>
chip_gen: v5e
topology: v5e:2x2
jax: 0.10.0
libtpu: 0.0.40
codegen_flags: <defaults>
</compile_context>

<pallas_src>
import functools

import jax
import jax.numpy as jnp
from jax import lax
from jax.experimental import pallas as pl
from jax.experimental.pallas import tpu as pltpu


def _gan_wrapper_kernel(img_ref, enc_ref, dec_ref,
                        w_in_aug_t_ref, w_cond_t_ref,
                        w_out_t_ref, b_out_ref,
                        out_ref):
    B, C, HW = img_ref.shape
    HD = w_out_t_ref.shape[1]

    # ---- pooled text conditioning: ONE fused MXU push for enc + dec -----------
    # 1/S of the mean is folded into w_cond_t, so a plain sublane sum suffices.
    enc_pool = jnp.sum(enc_ref[...], axis=1)                       # (B, D) f32
    dec_pool = jnp.sum(dec_ref[...], axis=1)                       # (B, D) f32
    pooled = jnp.concatenate([enc_pool, dec_pool],
                             axis=0).astype(jnp.bfloat16)          # (2B, D) bf16
    # (2HD, D) x (2B, D)^T -> (2HD, 2B); only the diagonal blocks are used, but
    # at K=D this is pure push/drain latency and one push beats two.
    cond = lax.dot_general(w_cond_t_ref[...], pooled,
                           dimension_numbers=(((1,), (1,)), ((), ())),
                           preferred_element_type=jnp.float32)     # (2HD, 2B) f32
    c_enc = cond[:HD, :B]                                          # (HD, B)
    c_dec = cond[HD:, B:]                                          # (HD, B)
    # FiLM params stay f32 (EUP tanh); tiled once to lane slabs matching the
    # (HD, B*HW) hidden activation layout (block b of HW lanes uses column b).
    scale_t = 1.0 + jnp.tanh(c_enc)
    shift_t = jnp.tanh(c_dec)
    scale_all = jnp.concatenate(
        [jnp.broadcast_to(scale_t[:, b:b + 1], (HD, HW)) for b in range(B)],
        axis=1)                                                    # (HD, B*HW)
    shift_all = jnp.concatenate(
        [jnp.broadcast_to(shift_t[:, b:b + 1], (HD, HW)) for b in range(B)],
        axis=1)                                                    # (HD, B*HW)

    # ---- whole-batch pixel slab: (C+1, B*HW) bf16 ------------------------------
    # Batch concatenated on the lane axis (B is tiny & static), f32 -> bf16 cast
    # done here on the VPU (no separate wrapper-side HBM cast pass), and a
    # constant-1 channel appended so b_in rides inside the MXU K padding.
    x_slab = jnp.concatenate([img_ref[b] for b in range(B)], axis=1)  # (C, B*HW) f32
    x_slab = x_slab.astype(jnp.bfloat16)
    ones_row = jnp.ones((1, B * HW), jnp.bfloat16)
    x_aug = jnp.concatenate([x_slab, ones_row], axis=0)               # (C+1, B*HW)

    # ---- one in-proj push, FiLM, one out-proj push -----------------------------
    h = jnp.dot(w_in_aug_t_ref[...], x_aug,
                preferred_element_type=jnp.float32)                   # (HD, B*HW) f32
    # Elementwise/transcendental path stays f32 (v5e VPU/EUP lack bf16).
    # (tanh-approx GELU; wrapped GAN is opaque so exact-erf parity is moot.)
    h = jax.nn.gelu(h, approximate=True)
    h = h * scale_all + shift_all                                      # FiLM

    y = jnp.dot(w_out_t_ref[...], h.astype(jnp.bfloat16),
                preferred_element_type=jnp.float32) + b_out_ref[...]   # (C, B*HW) f32
    y = jnp.tanh(y).astype(jnp.bfloat16)                               # [-1,1] -> bf16

    # lane-dense stores back into the (B, C, HW) output layout
    for b in range(B):
        out_ref[b] = y[:, b * HW:(b + 1) * HW]


def gan_wrapper_forward(image_nchw, encode_text, decode_text, params):
    """Text-conditioned image translation hot path as one Pallas TPU kernel."""
    B, C, H, W = image_nchw.shape
    HW = H * W
    S, D = encode_text.shape[1], encode_text.shape[2]
    HD = params["w_out_t"].shape[1]

    # Glue: NCHW -> (B, C, H*W) is a pure reshape (no transpose, no extra HBM
    # pass); the f32 image goes straight in, bf16 cast happens in-kernel.
    img_rows = image_nchw.reshape(B, C, HW)
    enc = encode_text.astype(jnp.float32)
    dec = decode_text.astype(jnp.float32)

    out_rows = pl.pallas_call(
        _gan_wrapper_kernel,
        # bf16 output halves the writeback; tanh output is bounded in [-1, 1].
        out_shape=jax.ShapeDtypeStruct((B, C, HW), jnp.bfloat16),
        # Single grid step: whole batch + weights + hidden activations are well
        # under 1 MiB of VMEM, so one invocation removes per-step pipeline
        # overhead and lets the scheduler overlap the conditioning path with
        # the big matmuls.
        grid=(1,),
        in_specs=[
            pl.BlockSpec((B, C, HW), lambda i: (0, 0, 0)),   # image pixels (f32)
            pl.BlockSpec((B, S, D), lambda i: (0, 0, 0)),    # encode_text
            pl.BlockSpec((B, S, D), lambda i: (0, 0, 0)),    # decode_text
            pl.BlockSpec((HD, C + 1), lambda i: (0, 0)),     # w_in_t | b_in (bf16)
            pl.BlockSpec((2 * HD, D), lambda i: (0, 0)),     # [w_enc_t; w_dec_t]/S (bf16)
            pl.BlockSpec((C, HD), lambda i: (0, 0)),         # w_out_t (bf16)
            pl.BlockSpec((C, 1), lambda i: (0, 0)),          # b_out
        ],
        out_specs=pl.BlockSpec((B, C, HW), lambda i: (0, 0, 0)),
        # TODO(synk): at real resolutions make HW a tiled grid axis (tiles a
        # multiple of 256 lanes), mark it "parallel" (core_parallel on v7x to
        # use both TensorCores), and set vmem_limit_bytes explicitly — sized to
        # v7x's 64 MiB VMEM vs the 128 MiB on v5e/v6e.
        compiler_params=pltpu.CompilerParams(
            dimension_semantics=("arbitrary",)),
    )(img_rows, enc, dec,
      params["w_in_aug_t"], params["w_cond_t"],
      params["w_out_t"], params["b_out"])

    # Glue: (B, C, H*W) -> NCHW is again a pure reshape.
    return out_rows.reshape(B, C, H, W)


def make_params(channels, text_dim, hidden, seq_len, seed=0):
    """Deterministic synthetic GAN-wrapper parameters (pre-fused layouts)."""
    k = jax.random.PRNGKey(seed)
    k1, k2, k3, k4 = jax.random.split(k, 4)
    c_scale = 1.0 / float(channels) ** 0.5
    d_scale = 1.0 / float(text_dim) ** 0.5
    h_scale = 1.0 / float(hidden) ** 0.5

    w_in = jax.random.normal(k1, (hidden, channels), jnp.float32) * c_scale
    b_in = jnp.zeros((hidden, 1), jnp.float32)
    # b_in folded into the in-proj weight as an extra K column (constant-1 input
    # channel appended in-kernel); rides inside the MXU's K-dimension padding.
    w_in_aug = jnp.concatenate([w_in, b_in], axis=1).astype(jnp.bfloat16)  # (HD, C+1)

    w_enc = jax.random.normal(k2, (hidden, text_dim), jnp.float32) * d_scale
    w_dec = jax.random.normal(k3, (hidden, text_dim), jnp.float32) * d_scale
    # enc/dec conditioning weights stacked along HD (one fused MXU push) with the
    # 1/S of the text mean folded in; bf16 MXU operands, f32 accumulate.
    w_cond = (jnp.concatenate([w_enc, w_dec], axis=0)
              * (1.0 / float(seq_len))).astype(jnp.bfloat16)               # (2HD, D)

    w_out = (jax.random.normal(k4, (channels, hidden), jnp.float32)
             * h_scale).astype(jnp.bfloat16)                               # (C, HD)
    b_out = jnp.zeros((channels, 1), jnp.float32)                          # (C, 1)

    return {"w_in_aug_t": w_in_aug, "w_cond_t": w_cond,
            "w_out_t": w_out, "b_out": b_out}


def text_unsupervised_translation_forward(sample_id, original_image,
                                          encode_text, decode_text, params):
    """Mirrors TextUnsupervisedTranslation.forward (eval mode)."""
    img = gan_wrapper_forward(original_image, encode_text, decode_text, params)
    losses = dict()
    weighted_loss = jnp.zeros_like(sample_id).astype(jnp.float32)
    return (original_image, img), weighted_loss, losses


if __name__ == "__main__":
    B, C, H, W = 2, 4, 16, 16
    S, D, HD = 8, 32, 32

    key = jax.random.PRNGKey(0)
    k_img, k_enc, k_dec = jax.random.split(key, 3)

    sample_id = jnp.arange(B, dtype=jnp.int32)
    original_image = jax.random.uniform(k_img, (B, C, H, W), jnp.float32)
    encode_text = jax.random.normal(k_enc, (B, S, D), jnp.float32)
    decode_text = jax.random.normal(k_dec, (B, S, D), jnp.float32)

    params = make_params(C, D, HD, S, seed=0)

    (orig, img), weighted_loss, losses = jax.jit(
        functools.partial(text_unsupervised_translation_forward,
                          params=params)
    )(sample_id, original_image, encode_text, decode_text)

    jax.block_until_ready(img)
    jax.block_until_ready(weighted_loss)

    assert orig.shape == (B, C, H, W)
    assert img.shape == (B, C, H, W)
    assert jnp.all(jnp.isfinite(img.astype(jnp.float32)))
    assert weighted_loss.shape == (B,) and weighted_loss.dtype == jnp.float32
    assert losses == {}
    print("KERNEL_OK")
</pallas_src>

<mosaic_0001>
module attributes {stable_mosaic.version = 11 : i64} {
  func.func @_gan_wrapper_kernel(%arg0: i32, %arg1: memref<2x4x256xf32, #tpu.memory_space<vmem>>, %arg2: memref<2x8x32xf32, #tpu.memory_space<vmem>>, %arg3: memref<2x8x32xf32, #tpu.memory_space<vmem>>, %arg4: memref<32x5xbf16, #tpu.memory_space<vmem>>, %arg5: memref<64x32xbf16, #tpu.memory_space<vmem>>, %arg6: memref<4x32xbf16, #tpu.memory_space<vmem>>, %arg7: memref<4x1xf32, #tpu.memory_space<vmem>>, %arg8: memref<2x4x256xbf16, #tpu.memory_space<vmem>>) attributes {dimension_semantics = [#tpu.dimension_semantics<arbitrary>], iteration_bounds = array<i64: 1>, scalar_prefetch = 0 : i64, scratch_operands = 0 : i64, tpu.core_type = #tpu.core_type<tc>, window_params = [{pipeline_mode = #tpu.pipeline_mode<synchronous>, transform_indices = @transform_0, window_bounds = array<i64: 2, 4, 256>}, {pipeline_mode = #tpu.pipeline_mode<synchronous>, transform_indices = @transform_1, window_bounds = array<i64: 2, 8, 32>}, {pipeline_mode = #tpu.pipeline_mode<synchronous>, transform_indices = @transform_2, window_bounds = array<i64: 2, 8, 32>}, {pipeline_mode = #tpu.pipeline_mode<synchronous>, transform_indices = @transform_3, window_bounds = array<i64: 32, 5>}, {pipeline_mode = #tpu.pipeline_mode<synchronous>, transform_indices = @transform_4, window_bounds = array<i64: 64, 32>}, {pipeline_mode = #tpu.pipeline_mode<synchronous>, transform_indices = @transform_5, window_bounds = array<i64: 4, 32>}, {pipeline_mode = #tpu.pipeline_mode<synchronous>, transform_indices = @transform_6, window_bounds = array<i64: 4, 1>}, {pipeline_mode = #tpu.pipeline_mode<synchronous>, transform_indices = @transform_7, window_bounds = array<i64: 2, 4, 256>}]} {
    %c0 = arith.constant 0 : index
    %c0_0 = arith.constant 0 : index
    %c0_1 = arith.constant 0 : index
    %0 = vector.load %arg2[%c0, %c0_0, %c0_1] : memref<2x8x32xf32, #tpu.memory_space<vmem>>, vector<2x8x32xf32>
    %cst = arith.constant dense<0.000000e+00> : vector<2x32xf32>
    %1 = vector.multi_reduction <add>, %0, %cst [1] : vector<2x8x32xf32> to vector<2x32xf32>
    %c0_2 = arith.constant 0 : index
    %c0_3 = arith.constant 0 : index
    %c0_4 = arith.constant 0 : index
    %2 = vector.load %arg3[%c0_2, %c0_3, %c0_4] : memref<2x8x32xf32, #tpu.memory_space<vmem>>, vector<2x8x32xf32>
    %cst_5 = arith.constant dense<0.000000e+00> : vector<2x32xf32>
    %3 = vector.multi_reduction <add>, %2, %cst_5 [1] : vector<2x8x32xf32> to vector<2x32xf32>
    %4 = tpu.concatenate %1, %3 in 0 : vector<2x32xf32>, vector<2x32xf32> -> vector<4x32xf32>
    %5 = arith.truncf %4 : vector<4x32xf32> to vector<4x32xbf16>
    %c0_6 = arith.constant 0 : index
    %c0_7 = arith.constant 0 : index
    %6 = vector.load %arg5[%c0_6, %c0_7] : memref<64x32xbf16, #tpu.memory_space<vmem>>, vector<64x32xbf16>
    %cst_8 = arith.constant dense<0.000000e+00> : vector<64x4xf32>
    %7 = tpu.matmul %6, %5, %cst_8 {dimension_numbers = #tpu.dot_dimension_numbers<[1], [1], [0], [0], [0, 0, 1, 0], [], []>} : vector<64x32xbf16>, vector<4x32xbf16>, vector<64x4xf32> -> vector<64x4xf32>
    %8 = vector.extract_strided_slice %7 {offsets = [0, 0], sizes = [32, 2], strides = [1, 1]} : vector<64x4xf32> to vector<32x2xf32>
    %9 = vector.extract_strided_slice %7 {offsets = [32, 2], sizes = [32, 2], strides = [1, 1]} : vector<64x4xf32> to vector<32x2xf32>
    %10 = math.tanh %8 : vector<32x2xf32>
    %cst_9 = arith.constant 1.000000e+00 : f32
    %11 = vector.broadcast %cst_9 : f32 to vector<32x2xf32>
    %12 = arith.addf %11, %10 : vector<32x2xf32>
    %13 = math.tanh %9 : vector<32x2xf32>
    %14 = vector.extract_strided_slice %12 {offsets = [0, 0], sizes = [32, 1], strides = [1, 1]} : vector<32x2xf32> to vector<32x1xf32>
    %15 = vector.shape_cast %14 : vector<32x1xf32> to vector<32x1xf32>
    %16 = vector.broadcast %15 : vector<32x1xf32> to vector<32x256xf32>
    %17 = vector.extract_strided_slice %12 {offsets = [0, 1], sizes = [32, 1], strides = [1, 1]} : vector<32x2xf32> to vector<32x1xf32>
    %18 = vector.shape_cast %17 : vector<32x1xf32> to vector<32x1xf32>
    %19 = vector.broadcast %18 : vector<32x1xf32> to vector<32x256xf32>
    %20 = tpu.concatenate %16, %19 in 1 : vector<32x256xf32>, vector<32x256xf32> -> vector<32x512xf32>
    %21 = vector.extract_strided_slice %13 {offsets = [0, 0], sizes = [32, 1], strides = [1, 1]} : vector<32x2xf32> to vector<32x1xf32>
    %22 = vector.shape_cast %21 : vector<32x1xf32> to vector<32x1xf32>
    %23 = vector.broadcast %22 : vector<32x1xf32> to vector<32x256xf32>
    %24 = vector.extract_strided_slice %13 {offsets = [0, 1], sizes = [32, 1], strides = [1, 1]} : vector<32x2xf32> to vector<32x1xf32>
    %25 = vector.shape_cast %24 : vector<32x1xf32> to vector<32x1xf32>
    %26 = vector.broadcast %25 : vector<32x1xf32> to vector<32x256xf32>
    %27 = tpu.concatenate %23, %26 in 1 : vector<32x256xf32>, vector<32x256xf32> -> vector<32x512xf32>
    %c0_10 = arith.constant 0 : index
    %c0_11 = arith.constant 0 : index
    %c0_12 = arith.constant 0 : index
    %28 = vector.load %arg1[%c0_10, %c0_11, %c0_12] : memref<2x4x256xf32, #tpu.memory_space<vmem>>, vector<1x4x256xf32>
    %29 = vector.shape_cast %28 : vector<1x4x256xf32> to vector<4x256xf32>
    %c1 = arith.constant 1 : index
    %c0_13 = arith.constant 0 : index
    %c0_14 = arith.constant 0 : index
    %30 = vector.load %arg1[%c1, %c0_13, %c0_14] : memref<2x4x256xf32, #tpu.memory_space<vmem>>, vector<1x4x256xf32>
    %31 = vector.shape_cast %30 : vector<1x4x256xf32> to vector<4x256xf32>
    %32 = tpu.concatenate %29, %31 in 1 : vector<4x256xf32>, vector<4x256xf32> -> vector<4x512xf32>
    %33 = arith.truncf %32 : vector<4x512xf32> to vector<4x512xbf16>
    %cst_15 = arith.constant 1.000000e+00 : bf16
    %34 = vector.broadcast %cst_15 : bf16 to vector<1x512xbf16>
    %35 = tpu.concatenate %33, %34 in 0 : vector<4x512xbf16>, vector<1x512xbf16> -> vector<5x512xbf16>
    %c0_16 = arith.constant 0 : index
    %c0_17 = arith.constant 0 : index
    %36 = vector.load %arg4[%c0_16, %c0_17] : memref<32x5xbf16, #tpu.memory_space<vmem>>, vector<32x5xbf16>
    %cst_18 = arith.constant dense<0.000000e+00> : vector<32x512xf32>
    %37 = tpu.matmul %36, %35, %cst_18 {dimension_numbers = #tpu.dot_dimension_numbers<[1], [0], [0], [1], [0, 0, 1, 1], [], []>} : vector<32x5xbf16>, vector<5x512xbf16>, vector<32x512xf32> -> vector<32x512xf32>
    %38 = arith.mulf %37, %37 : vector<32x512xf32>
    %39 = arith.mulf %37, %38 : vector<32x512xf32>
    %cst_19 = arith.constant 4.471500e-02 : f32
    %40 = vector.broadcast %cst_19 : f32 to vector<32x512xf32>
    %41 = arith.mulf %40, %39 : vector<32x512xf32>
    %42 = arith.addf %37, %41 : vector<32x512xf32>
    %cst_20 = arith.constant 0.797884583 : f32
    %43 = vector.broadcast %cst_20 : f32 to vector<32x512xf32>
    %44 = arith.mulf %43, %42 : vector<32x512xf32>
    %45 = math.tanh %44 : vector<32x512xf32>
    %cst_21 = arith.constant 1.000000e+00 : f32
    %46 = vector.broadcast %cst_21 : f32 to vector<32x512xf32>
    %47 = arith.addf %46, %45 : vector<32x512xf32>
    %cst_22 = arith.constant 5.000000e-01 : f32
    %48 = vector.broadcast %cst_22 : f32 to vector<32x512xf32>
    %49 = arith.mulf %48, %47 : vector<32x512xf32>
    %50 = arith.mulf %37, %49 : vector<32x512xf32>
    %51 = arith.mulf %50, %20 : vector<32x512xf32>
    %52 = arith.addf %51, %27 : vector<32x512xf32>
    %c0_23 = arith.constant 0 : index
    %c0_24 = arith.constant 0 : index
    %53 = vector.load %arg6[%c0_23, %c0_24] : memref<4x32xbf16, #tpu.memory_space<vmem>>, vector<4x32xbf16>
    %54 = arith.truncf %52 : vector<32x512xf32> to vector<32x512xbf16>
    %cst_25 = arith.constant dense<0.000000e+00> : vector<4x512xf32>
    %55 = tpu.matmul %53, %54, %cst_25 {dimension_numbers = #tpu.dot_dimension_numbers<[1], [0], [0], [1], [0, 0, 1, 1], [], []>} : vector<4x32xbf16>, vector<32x512xbf16>, vector<4x512xf32> -> vector<4x512xf32>
    %c0_26 = arith.constant 0 : index
    %c0_27 = arith.constant 0 : index
    %56 = vector.load %arg7[%c0_26, %c0_27] : memref<4x1xf32, #tpu.memory_space<vmem>>, vector<4x1xf32>
    %57 = vector.broadcast %56 : vector<4x1xf32> to vector<4x512xf32>
    %58 = arith.addf %55, %57 : vector<4x512xf32>
    %59 = math.tanh %58 : vector<4x512xf32>
    %60 = arith.truncf %59 : vector<4x512xf32> to vector<4x512xbf16>
    %61 = vector.extract_strided_slice %60 {offsets = [0, 0], sizes = [4, 256], strides = [1, 1]} : vector<4x512xbf16> to vector<4x256xbf16>
    %c0_28 = arith.constant 0 : index
    %c0_29 = arith.constant 0 : index
    %c0_30 = arith.constant 0 : index
    %62 = vector.load %arg8[%c0_28, %c0_29, %c0_30] : memref<2x4x256xbf16, #tpu.memory_space<vmem>>, vector<1x4x256xbf16>
    %63 = vector.shape_cast %62 : vector<1x4x256xbf16> to vector<4x256xbf16>
    %64 = vector.shape_cast %61 : vector<4x256xbf16> to vector<1x4x256xbf16>
    tpu.vector_store %arg8[%c0_28, %c0_29, %c0_30], %64 {strides = array<i32>} : memref<2x4x256xbf16, #tpu.memory_space<vmem>>, vector<1x4x256xbf16>,
    %65 = vector.extract_strided_slice %60 {offsets = [0, 256], sizes = [4, 256], strides = [1, 1]} : vector<4x512xbf16> to vector<4x256xbf16>
    %c1_31 = arith.constant 1 : index
    %c0_32 = arith.constant 0 : index
    %c0_33 = arith.constant 0 : index
    %66 = vector.load %arg8[%c1_31, %c0_32, %c0_33] : memref<2x4x256xbf16, #tpu.memory_space<vmem>>, vector<1x4x256xbf16>
    %67 = vector.shape_cast %66 : vector<1x4x256xbf16> to vector<4x256xbf16>
    %68 = vector.shape_cast %65 : vector<4x256xbf16> to vector<1x4x256xbf16>
    tpu.vector_store %arg8[%c1_31, %c0_32, %c0_33], %68 {strides = array<i32>} : memref<2x4x256xbf16, #tpu.memory_space<vmem>>, vector<1x4x256xbf16>,
    return
  }
  func.func @transform_0(%arg0: i32) -> (i32, i32, i32) {
    %c0_i32 = arith.constant 0 : i32
    %c0_i32_0 = arith.constant 0 : i32
    %c0_i32_1 = arith.constant 0 : i32
    %c0_i32_2 = arith.constant 0 : i32
    return %c0_i32, %c0_i32_0, %c0_i32_1 : i32, i32, i32
  }
  func.func @transform_1(%arg0: i32) -> (i32, i32, i32) {
    %c0_i32 = arith.constant 0 : i32
    %c0_i32_0 = arith.constant 0 : i32
    %c0_i32_1 = arith.constant 0 : i32
    %c0_i32_2 = arith.constant 0 : i32
    return %c0_i32, %c0_i32_0, %c0_i32_1 : i32, i32, i32
  }
  func.func @transform_2(%arg0: i32) -> (i32, i32, i32) {
    %c0_i32 = arith.constant 0 : i32
    %c0_i32_0 = arith.constant 0 : i32
    %c0_i32_1 = arith.constant 0 : i32
    %c0_i32_2 = arith.constant 0 : i32
    return %c0_i32, %c0_i32_0, %c0_i32_1 : i32, i32, i32
  }
  func.func @transform_3(%arg0: i32) -> (i32, i32) {
    %c0_i32 = arith.constant 0 : i32
    %c0_i32_0 = arith.constant 0 : i32
    %c0_i32_1 = arith.constant 0 : i32
    return %c0_i32, %c0_i32_0 : i32, i32
  }
  func.func @transform_4(%arg0: i32) -> (i32, i32) {
    %c0_i32 = arith.constant 0 : i32
    %c0_i32_0 = arith.constant 0 : i32
    %c0_i32_1 = arith.constant 0 : i32
    return %c0_i32, %c0_i32_0 : i32, i32
  }
  func.func @transform_5(%arg0: i32) -> (i32, i32) {
    %c0_i32 = arith.constant 0 : i32
    %c0_i32_0 = arith.constant 0 : i32
    %c0_i32_1 = arith.constant 0 : i32
    return %c0_i32, %c0_i32_0 : i32, i32
  }
  func.func @transform_6(%arg0: i32) -> (i32, i32) {
    %c0_i32 = arith.constant 0 : i32
    %c0_i32_0 = arith.constant 0 : i32
    %c0_i32_1 = arith.constant 0 : i32
    return %c0_i32, %c0_i32_0 : i32, i32
  }
  func.func @transform_7(%arg0: i32) -> (i32, i32, i32) {
    %c0_i32 = arith.constant 0 : i32
    %c0_i32_0 = arith.constant 0 : i32
    %c0_i32_1 = arith.constant 0 : i32
    %c0_i32_2 = arith.constant 0 : i32
    return %c0_i32, %c0_i32_0, %c0_i32_1 : i32, i32, i32
  }
}

</mosaic_0001>

<llo_original>
// kernel: text_unsupervised_translation_forward.1
$region0: #{text_unsupervised_translation_forward.1}
  #allocation0 [shape = 'u32[]', space=smem, size = 0x4, offset = 0x4, fixed_abs, tag = 'smem constant byte address 0x4 - core index']
  #allocation1 [shape = 'u32[72,128]{1,0:T(1,128)}', space=vmem, size = 0x9000, scoped, tag = 'internal scratch']
  %s0 = inlined_call_operand.vmem [shape: f32[2,4,256], index: 0, kind: input, shape index: {}]
  %s1 = inlined_call_operand.hbm [shape: f32[2,8,32], index: 1, kind: input, shape index: {}]
  %s2 = inlined_call_operand.hbm [shape: f32[2,8,32], index: 2, kind: input, shape index: {}]
  %s3 = inlined_call_operand.vmem [shape: bf16[32,5], index: 3, kind: input, shape index: {}]
  %s4 = inlined_call_operand.vmem [shape: bf16[64,32], index: 4, kind: input, shape index: {}]
  %s5 = inlined_call_operand.vmem [shape: bf16[4,32], index: 5, kind: input, shape index: {}]
  %s6 = inlined_call_operand.vmem [shape: f32[4,1], index: 6, kind: input, shape index: {}]
  %s7 = inlined_call_operand.vmem [shape: bf16[2,4,256], index: 7, kind: output, shape index: {}]
  %s8 = sld [smem:[#allocation0]]
  $region46: #{text_unsupervised_translation_forward.1} parent=0
    _
  %s10 = ssub.s32 1, %s8
  %s11 = scalar_select 0, %s10, %s8
  $region1: #{text_unsupervised_translation_forward.1} parent=0
    #allocation2 [shape = 'u8[8192]{0}', space=vmem, size = 0x2000, scoped, tag = 'input window, operand 1, single buffered']
    #allocation3 [shape = 's32[1]{0}', space=sflag, size = 0x4, scoped, tag = 'scoped memory for text_unsupervised_translation_forward.1']
    #allocation4 [shape = 'u8[8192]{0}', space=vmem, size = 0x2000, scoped, tag = 'input window, operand 2, single buffered']
    #allocation5 [shape = 's32[1]{0}', space=sflag, size = 0x4, scoped, tag = 'scoped memory for text_unsupervised_translation_forward.1']
    %12 = vsyncpa [#allocation3], 0
    %13 = vsyncpa [#allocation5], 0
    // Predicated region
    $region2: #{text_unsupervised_translation_forward.1} parent=1 // pred_check
      _
    $region3: #{text_unsupervised_translation_forward.1} parent=1 // pred_check_branch
      %15 = sbr.rel (0) target = $region5
    $region4: #{text_unsupervised_translation_forward.1} parent=1 // pred_region
      _
    $region5: #{text_unsupervised_translation_forward.1} parent=1 // pred_fallthru
      _
    // Predicated region
    $region6: #{text_unsupervised_translation_forward.1} parent=1 // pred_check
      _
    $region7: #{text_unsupervised_translation_forward.1} parent=1 // pred_check_branch
      %17 = sbr.rel (0) target = $region9
    $region8: #{text_unsupervised_translation_forward.1} parent=1 // pred_region
      %19 = vsyncadd [#allocation3], 0
      %s20 = sshll.u32 %s1, 4
      %s21 = int_to_ptr.hbm [resolvable:$true] %s20
      %s22 = sshll.u32 [#allocation2], 4
      %s23 = int_to_ptr.vmem [resolvable:$true] %s22
      %28 = dma.hbm_to_vmem [thread:$0]  %s21, 256, %s23, [#allocation3], 128, 128, 8
    $region9: #{text_unsupervised_translation_forward.1} parent=1 // pred_fallthru
      _
    // Predicated region
    $region10: #{text_unsupervised_translation_forward.1} parent=1 // pred_check
      _
    $region11: #{text_unsupervised_translation_forward.1} parent=1 // pred_check_branch
      %30 = sbr.rel (0) target = $region13
    $region12: #{text_unsupervised_translation_forward.1} parent=1 // pred_region
      %32 = vsyncadd [#allocation5], 0
      %s33 = sshll.u32 %s2, 4
      %s34 = int_to_ptr.hbm [resolvable:$true] %s33
      %s35 = sshll.u32 [#allocation4], 4
      %s36 = int_to_ptr.vmem [resolvable:$true] %s35
      %41 = dma.hbm_to_vmem [thread:$0]  %s34, 256, %s36, [#allocation5], 128, 128, 8
    $region13: #{text_unsupervised_translation_forward.1} parent=1 // pred_fallthru
      _
    // Predicated region
    $region14: #{text_unsupervised_translation_forward.1} parent=1 // pred_check
      _
    $region15: #{text_unsupervised_translation_forward.1} parent=1 // pred_check_branch
      %43 = sbr.rel (0) target = $region17
    $region16: #{text_unsupervised_translation_forward.1} parent=1 // pred_region
      _
    $region17: #{text_unsupervised_translation_forward.1} parent=1 // pred_fallthru
      _
    // Predicated region
    $region18: #{text_unsupervised_translation_forward.1} parent=1 // pred_check
      _
    $region19: #{text_unsupervised_translation_forward.1} parent=1 // pred_check_branch
      %45 = sbr.rel (0) target = $region21
    $region20: #{text_unsupervised_translation_forward.1} parent=1 // pred_region
      _
    $region21: #{text_unsupervised_translation_forward.1} parent=1 // pred_fallthru
      _
    // Predicated region
    $region22: #{text_unsupervised_translation_forward.1} parent=1 // pred_check
      _
    $region23: #{text_unsupervised_translation_forward.1} parent=1 // pred_check_branch
      %47 = sbr.rel (0) target = $region25
    $region24: #{text_unsupervised_translation_forward.1} parent=1 // pred_region
      _
    $region25: #{text_unsupervised_translation_forward.1} parent=1 // pred_fallthru
      _
    // Predicated region
    $region26: #{text_unsupervised_translation_forward.1} parent=1 // pred_check
      _
    $region27: #{text_unsupervised_translation_forward.1} parent=1 // pred_check_branch
      %49 = sbr.rel (0) target = $region29
    $region28: #{text_unsupervised_translation_forward.1} parent=1 // pred_region
      _
    $region29: #{text_unsupervised_translation_forward.1} parent=1 // pred_fallthru
      _
    // Predicated region
    $region30: #{text_unsupervised_translation_forward.1} parent=1 // pred_check
      _
    $region31: #{text_unsupervised_translation_forward.1} parent=1 // pred_check_branch
      %51 = sbr.rel (0) target = $region33
    $region32: #{text_unsupervised_translation_forward.1} parent=1 // pred_region
      %53 = dma.done [#allocation3], 256
    $region33: #{text_unsupervised_translation_forward.1} parent=1 // pred_fallthru
      _
    // Predicated region
    $region34: #{text_unsupervised_translation_forward.1} parent=1 // pred_check
      _
    $region35: #{text_unsupervised_translation_forward.1} parent=1 // pred_check_branch
      %55 = sbr.rel (0) target = $region37
    $region36: #{text_unsupervised_translation_forward.1} parent=1 // pred_region
      %57 = dma.done [#allocation5], 256
    $region37: #{text_unsupervised_translation_forward.1} parent=1 // pred_fallthru
      _
    %v60 = vld [vmem:[#allocation2] sm:$0xff]
    %v61 = vld [vmem:[#allocation2 + $0x8] sm:$0xff]
    %vm62 = vcmask 261120
    %v63 = vsel %vm62, %v60, 0.0
    %v64 = vrot.slane %v63, 4
    %v65 = vadd.f32 %v63, %v64
    %v66 = vrot.slane %v65, 2
    %v67 = vadd.f32 %v65, %v66
    %v68 = vrot.slane %v67, 1
    %v69 = vadd.f32 %v67, %v68
    %v70 = vsel %vm62, %v61, 0.0
    %v71 = vrot.slane %v70, 4
    %v72 = vadd.f32 %v70, %v71
    %v73 = vrot.slane %v72, 2
    %v74 = vadd.f32 %v72, %v73
    %v75 = vrot.slane %v74, 1
    %v76 = vadd.f32 %v74, %v75
    %v77 = vld [vmem:[#allocation4] sm:$0xff]
    %v78 = vld [vmem:[#allocation4 + $0x8] sm:$0xff]
    %v79 = vsel %vm62, %v77, 0.0
    %v80 = vrot.slane %v79, 4
    %v81 = vadd.f32 %v79, %v80
    %v82 = vrot.slane %v81, 2
    %v83 = vadd.f32 %v81, %v82
    %v84 = vrot.slane %v83, 1
    %v85 = vadd.f32 %v83, %v84
    %v86 = vsel %vm62, %v78, 0.0
    %v87 = vrot.slane %v86, 4
    %v88 = vadd.f32 %v86, %v87
    %v89 = vrot.slane %v88, 2
    %v90 = vadd.f32 %v88, %v89
    %v91 = vrot.slane %v90, 1
    %v92 = vadd.f32 %v90, %v91
    %vm95 = vcmask 1041409
    %v96 = vsel %vm95, %v76, %v69
    %vm100 = vcmask 1043459
    %v101 = vsel %vm100, %v92, %v85
    %vm103 = vcmask 1041408
    %v104 = vsel %vm103, %v96, %v101
    %v105 = vpack.c.bf16 %v104, %v104
    %v106 = vld [vmem:[%s4] sm:$0xf]
    %v107 = vld [vmem:[%s4 + $0x4] sm:$0xf]
    %v108 = vld [vmem:[%s4 + $0x8] sm:$0xf]
    %v109 = vld [vmem:[%s4 + $0xc] sm:$0xf]
    %v110 = vld [vmem:[%s4 + $0x10] sm:$0xf]
    %v111 = vld [vmem:[%s4 + $0x14] sm:$0xf]
    %v112 = vld [vmem:[%s4 + $0x18] sm:$0xf]
    %v113 = vld [vmem:[%s4 + $0x1c] sm:$0xf]
    %v122 = vunpack.c.l.b16 %v106
    %v123 = vunpack.c.l.b16 %v107
    %v124 = vunpack.c.l.b16 %v108
    %v125 = vunpack.c.l.b16 %v109
    %v126 = vunpack.c.l.b16 %v110
    %v127 = vunpack.c.l.b16 %v111
    %v128 = vunpack.c.l.b16 %v112
    %v129 = vunpack.c.l.b16 %v113
    %v130 = vpack.c.b16 %v123, %v122
    %v131 = vpack.c.b16 %v125, %v124
    %v132 = vpack.c.b16 %v127, %v126
    %v133 = vpack.c.b16 %v129, %v128
    %v135 = vsel %vm62, %v130, 0
    %v138 = vsel %vm62, %v131, 0
    %v141 = vsel %vm62, %v132, 0
    %v144 = vsel %vm62, %v133, 0
    %v147 = vsel %vm62, %v105, 0
    %149 = vmatpush.bf16.xpose.msra.mxu0 0
    %150 = vmatpush.bf16.xpose.msra.mxu0 0
    %151 = vmatpush.bf16.xpose.msra.mxu0 0
    %152 = vmatpush.bf16.xpose.msra.mxu0 0
    %153 = vmatpush.bf16.xpose.msra.mxu0 0
    %154 = vmatpush.bf16.xpose.msra.mxu0 0
    %155 = vmatpush.bf16.xpose.msra.mxu0 0
    %156 = vmatpush.bf16.xpose.msra.mxu0 %v147
    %157 = vmatmul.bf16.gmra.mxu0 %v135
    %v158 = vpop.f32.mrf.mxu0
    %v159 = vadd.f32 0.0, %v158
    %v160 = vpop.f32.mrf.mxu0
    %v161 = vadd.f32 0.0, %v160
    %162 = vmatmul.bf16.gmra.mxu0 %v138
    %v163 = vpop.f32.mrf.mxu0
    %v164 = vadd.f32 0.0, %v163
    %v165 = vpop.f32.mrf.mxu0
    %v166 = vadd.f32 0.0, %v165
    %167 = vmatmul.bf16.gmra.mxu0 %v141
    %v168 = vpop.f32.mrf.mxu0
    %v169 = vadd.f32 0.0, %v168
    %v170 = vpop.f32.mrf.mxu0
    %v171 = vadd.f32 0.0, %v170
    %172 = vmatmul.bf16.gmra.mxu0 %v144
    %v173 = vpop.f32.mrf.mxu0
    %v174 = vadd.f32 0.0, %v173
    %v175 = vpop.f32.mrf.mxu0
    %v176 = vadd.f32 0.0, %v175
    %177 = vdwg.mxu0
    %v178 = vtanh.pop %v159
    %v179 = vtanh.pop %v161
    %v180 = vtanh.pop %v164
    %v181 = vtanh.pop %v166
    %v182 = vadd.f32 %v178, 1.0
    %v183 = vadd.f32 %v179, 1.0
    %v184 = vadd.f32 %v180, 1.0
    %v185 = vadd.f32 %v181, 1.0
    %v186 = vtanh.pop %v169
    %v187 = vtanh.pop %v171
    %v188 = vtanh.pop %v174
    %v189 = vtanh.pop %v176
    %191 = vset.pattern.permute.xlu0 0
    %192 = vperm.xlu0 %191, %v182
    %v193 = vpop.permute.xlu0 %192
    %196 = vset.pattern.permute.xlu0 0
    %197 = vperm.xlu0 %196, %v183
    %v198 = vpop.permute.xlu0 %197
    %201 = vset.pattern.permute.xlu0 0
    %202 = vperm.xlu0 %201, %v184
    %v203 = vpop.permute.xlu0 %202
    %206 = vset.pattern.permute.xlu0 0
    %207 = vperm.xlu0 %206, %v185
    %v208 = vpop.permute.xlu0 %207
    %210 = vset.pattern.permute.xlu0 1
    %211 = vperm.xlu0 %210, %v182
    %v212 = vpop.permute.xlu0 %211
    %214 = vset.pattern.permute.xlu0 1
    %215 = vperm.xlu0 %214, %v183
    %v216 = vpop.permute.xlu0 %215
    %218 = vset.pattern.permute.xlu0 1
    %219 = vperm.xlu0 %218, %v184
    %v220 = vpop.permute.xlu0 %219
    %222 = vset.pattern.permute.xlu0 1
    %223 = vperm.xlu0 %222, %v185
    %v224 = vpop.permute.xlu0 %223
    %227 = vset.pattern.permute.xlu0 2
    %228 = vperm.xlu0 %227, %v186
    %v229 = vpop.permute.xlu0 %228
    %232 = vset.pattern.permute.xlu0 2
    %233 = vperm.xlu0 %232, %v187
    %v234 = vpop.permute.xlu0 %233
    %237 = vset.pattern.permute.xlu0 2
    %238 = vperm.xlu0 %237, %v188
    %v239 = vpop.permute.xlu0 %238
    %242 = vset.pattern.permute.xlu0 2
    %243 = vperm.xlu0 %242, %v189
    %v244 = vpop.permute.xlu0 %243
    %246 = vset.pattern.permute.xlu0 3
    %247 = vperm.xlu0 %246, %v186
    %v248 = vpop.permute.xlu0 %247
    %250 = vset.pattern.permute.xlu0 3
    %251 = vperm.xlu0 %250, %v187
    %v252 = vpop.permute.xlu0 %251
    %254 = vset.pattern.permute.xlu0 3
    %255 = vperm.xlu0 %254, %v188
    %v256 = vpop.permute.xlu0 %255
    %258 = vset.pattern.permute.xlu0 3
    %259 = vperm.xlu0 %258, %v189
    %v260 = vpop.permute.xlu0 %259
    %v262 = vld [vmem:[%s0] sm:$0xff]
    %s263 = scalar_lea.vmem %s0, 8
    %v264 = vld [vmem:[%s263] sm:$0xff]
    %266 = vst [vmem:[#allocation1] ss:$2 sm:$0xff] %v262
    %v267 = vld.sshfl [vmem:[#allocation1] sm:$0xff pattern:$0x75316420]
    %v268 = vld.sshfl [vmem:[#allocation1 + $0x8] sm:$0xff pattern:$0x75316420]
    %272 = vst [vmem:[#allocation1] ss:$2 sm:$0xff] %v264
    %v273 = vld.sshfl [vmem:[#allocation1] sm:$0xff pattern:$0x75316420]
    %v274 = vld.sshfl [vmem:[#allocation1 + $0x8] sm:$0xff pattern:$0x75316420]
    %v277 = vpack.c.bf16 %v268, %v267
    %v278 = vpack.c.bf16 %v274, %v273
    %v281 = vunpack.c.l.b16 %v277
    %v282 = vunpack.c.h.b16 %v277
    %v283 = vunpack.c.l.b16 %v278
    %v284 = vunpack.c.h.b16 %v278
    %v285 = vpack.c.b16 %v281, %v281
    %v286 = vpack.c.b16 %v282, %v282
    %v287 = vpack.c.b16 %v283, %v283
    %v288 = vpack.c.b16 %v284, %v284
    %v291 = vsel %vm103, %v285, 1065369472
    %v293 = vsel %vm103, %v286, 1065369472
    %v295 = vsel %vm103, %v287, 1065369472
    %v297 = vsel %vm103, %v288, 1065369472
    %v298 = vld [vmem:[%s3] sm:$0xf]
    %v299 = vld [vmem:[%s3 + $0x4] sm:$0xf]
    %v300 = vld [vmem:[%s3 + $0x8] sm:$0xf]
    %v301 = vld [vmem:[%s3 + $0xc] sm:$0xf]
    %v306 = vunpack.c.l.b16 %v298
    %v307 = vunpack.c.l.b16 %v299
    %v308 = vunpack.c.l.b16 %v300
    %v309 = vunpack.c.l.b16 %v301
    %v310 = vpack.c.b16 %v307, %v306
    %v311 = vpack.c.b16 %v309, %v308
    %vm312 = vcmask 39936
    %v314 = vsel %vm312, %v310, 0
    %v317 = vsel %vm312, %v311, 0
    %vm319 = vcmask 1042432
    %v320 = vsel %vm103, 4294967295, 65535
    %v321 = vsel %vm319, %v320, 0
    %v322 = vand.u32 %v291, %v321
    %v324 = vand.u32 %v293, %v321
    %v326 = vand.u32 %v295, %v321
    %v328 = vand.u32 %v297, %v321
    %330 = vmatpush.bf16.msra.mxu0 0
    %331 = vmatpush.bf16.msra.mxu0 0
    %332 = vmatpush.bf16.msra.mxu0 0
    %333 = vmatpush.bf16.msra.mxu0 0
    %334 = vmatpush.bf16.msra.mxu0 0
    %335 = vmatpush.bf16.msra.mxu0 0
    %336 = vmatpush.bf16.msra.mxu0 0
    %337 = vmatpush.bf16.msra.mxu0 %v322
    %338 = vmatmul.bf16.gmra.mxu0 %v314
    %v339 = vpop.f32.mrf.mxu0
    %v340 = vadd.f32 0.0, %v339
    %v341 = vpop.f32.mrf.mxu0
    %v342 = vadd.f32 0.0, %v341
    %343 = vmatmul.bf16.gmra.mxu0 %v317
    %v344 = vpop.f32.mrf.mxu0
    %v345 = vadd.f32 0.0, %v344
    %v346 = vpop.f32.mrf.mxu0
    %v347 = vadd.f32 0.0, %v346
    %348 = vdwg.mxu0
    %349 = vmatpush.bf16.msra.mxu0 0
    %350 = vmatpush.bf16.msra.mxu0 0
    %351 = vmatpush.bf16.msra.mxu0 0
    %352 = vmatpush.bf16.msra.mxu0 0
    %353 = vmatpush.bf16.msra.mxu0 0
    %354 = vmatpush.bf16.msra.mxu0 0
    %355 = vmatpush.bf16.msra.mxu0 0
    %356 = vmatpush.bf16.msra.mxu0 %v324
    %357 = vmatmul.bf16.gmra.mxu0 %v314
    %v358 = vpop.f32.mrf.mxu0
    %v359 = vadd.f32 0.0, %v358
    %v360 = vpop.f32.mrf.mxu0
    %v361 = vadd.f32 0.0, %v360
    %362 = vmatmul.bf16.gmra.mxu0 %v317
    %v363 = vpop.f32.mrf.mxu0
    %v364 = vadd.f32 0.0, %v363
    %v365 = vpop.f32.mrf.mxu0
    %v366 = vadd.f32 0.0, %v365
    %367 = vdwg.mxu0
    %368 = vmatpush.bf16.msra.mxu0 0
    %369 = vmatpush.bf16.msra.mxu0 0
    %370 = vmatpush.bf16.msra.mxu0 0
    %371 = vmatpush.bf16.msra.mxu0 0
    %372 = vmatpush.bf16.msra.mxu0 0
    %373 = vmatpush.bf16.msra.mxu0 0
    %374 = vmatpush.bf16.msra.mxu0 0
    %375 = vmatpush.bf16.msra.mxu0 %v326
    %376 = vmatmul.bf16.gmra.mxu0 %v314
    %v377 = vpop.f32.mrf.mxu0
    %v378 = vadd.f32 0.0, %v377
    %v379 = vpop.f32.mrf.mxu0
    %v380 = vadd.f32 0.0, %v379
    %381 = vmatmul.bf16.gmra.mxu0 %v317
    %v382 = vpop.f32.mrf.mxu0
    %v383 = vadd.f32 0.0, %v382
    %v384 = vpop.f32.mrf.mxu0
    %v385 = vadd.f32 0.0, %v384
    %386 = vdwg.mxu0
    %387 = vmatpush.bf16.msra.mxu0 0
    %388 = vmatpush.bf16.msra.mxu0 0
    %389 = vmatpush.bf16.msra.mxu0 0
    %390 = vmatpush.bf16.msra.mxu0 0
    %391 = vmatpush.bf16.msra.mxu0 0
    %392 = vmatpush.bf16.msra.mxu0 0
    %393 = vmatpush.bf16.msra.mxu0 0
    %394 = vmatpush.bf16.msra.mxu0 %v328
    %395 = vmatmul.bf16.gmra.mxu0 %v314
    %v396 = vpop.f32.mrf.mxu0
    %v397 = vadd.f32 0.0, %v396
    %v398 = vpop.f32.mrf.mxu0
    %v399 = vadd.f32 0.0, %v398
    %400 = vmatmul.bf16.gmra.mxu0 %v317
    %v401 = vpop.f32.mrf.mxu0
    %v402 = vadd.f32 0.0, %v401
    %v403 = vpop.f32.mrf.mxu0
    %v404 = vadd.f32 0.0, %v403
    %405 = vdwg.mxu0
    %v406 = vmul.f32 %v340, %v340
    %v407 = vmul.f32 %v359, %v359
    %v408 = vmul.f32 %v378, %v378
    %v409 = vmul.f32 %v397, %v397
    %v410 = vmul.f32 %v342, %v342
    %v411 = vmul.f32 %v361, %v361
    %v412 = vmul.f32 %v380, %v380
    %v413 = vmul.f32 %v399, %v399
    %v414 = vmul.f32 %v345, %v345
    %v415 = vmul.f32 %v364, %v364
    %v416 = vmul.f32 %v383, %v383
    %v417 = vmul.f32 %v402, %v402
    %v418 = vmul.f32 %v347, %v347
    %v419 = vmul.f32 %v366, %v366
    %v420 = vmul.f32 %v385, %v385
    %v421 = vmul.f32 %v404, %v404
    %v422 = vmul.f32 %v340, %v406
    %v423 = vmul.f32 %v359, %v407
    %v424 = vmul.f32 %v378, %v408
    %v425 = vmul.f32 %v397, %v409
    %v426 = vmul.f32 %v342, %v410
    %v427 = vmul.f32 %v361, %v411
    %v428 = vmul.f32 %v380, %v412
    %v429 = vmul.f32 %v399, %v413
    %v430 = vmul.f32 %v345, %v414
    %v431 = vmul.f32 %v364, %v415
    %v432 = vmul.f32 %v383, %v416
    %v433 = vmul.f32 %v402, %v417
    %v434 = vmul.f32 %v347, %v418
    %v435 = vmul.f32 %v366, %v419
    %v436 = vmul.f32 %v385, %v420
    %v437 = vmul.f32 %v404, %v421
    %v438 = vmul.f32 %v422, 0.044715
    %v439 = vmul.f32 %v423, 0.044715
    %v440 = vmul.f32 %v424, 0.044715
    %v441 = vmul.f32 %v425, 0.044715
    %v442 = vmul.f32 %v426, 0.044715
    %v443 = vmul.f32 %v427, 0.044715
    %v444 = vmul.f32 %v428, 0.044715
    %v445 = vmul.f32 %v429, 0.044715
    %v446 = vmul.f32 %v430, 0.044715
    %v447 = vmul.f32 %v431, 0.044715
    %v448 = vmul.f32 %v432, 0.044715
    %v449 = vmul.f32 %v433, 0.044715
    %v450 = vmul.f32 %v434, 0.044715
    %v451 = vmul.f32 %v435, 0.044715
    %v452 = vmul.f32 %v436, 0.044715
    %v453 = vmul.f32 %v437, 0.044715
    %v454 = vadd.f32 %v340, %v438
    %v455 = vadd.f32 %v359, %v439
    %v456 = vadd.f32 %v378, %v440
    %v457 = vadd.f32 %v397, %v441
    %v458 = vadd.f32 %v342, %v442
    %v459 = vadd.f32 %v361, %v443
    %v460 = vadd.f32 %v380, %v444
    %v461 = vadd.f32 %v399, %v445
    %v462 = vadd.f32 %v345, %v446
    %v463 = vadd.f32 %v364, %v447
    %v464 = vadd.f32 %v383, %v448
    %v465 = vadd.f32 %v402, %v449
    %v466 = vadd.f32 %v347, %v450
    %v467 = vadd.f32 %v366, %v451
    %v468 = vadd.f32 %v385, %v452
    %v469 = vadd.f32 %v404, %v453
    %v470 = vmul.f32 %v454, 0.7978846
    %v471 = vmul.f32 %v455, 0.7978846
    %v472 = vmul.f32 %v456, 0.7978846
    %v473 = vmul.f32 %v457, 0.7978846
    %v474 = vmul.f32 %v458, 0.7978846
    %v475 = vmul.f32 %v459, 0.7978846
    %v476 = vmul.f32 %v460, 0.7978846
    %v477 = vmul.f32 %v461, 0.7978846
    %v478 = vmul.f32 %v462, 0.7978846
    %v479 = vmul.f32 %v463, 0.7978846
    %v480 = vmul.f32 %v464, 0.7978846
    %v481 = vmul.f32 %v465, 0.7978846
    %v482 = vmul.f32 %v466, 0.7978846
    %v483 = vmul.f32 %v467, 0.7978846
    %v484 = vmul.f32 %v468, 0.7978846
    %v485 = vmul.f32 %v469, 0.7978846
    %v486 = vtanh.pop %v470
    %v487 = vtanh.pop %v471
    %v488 = vtanh.pop %v472
    %v489 = vtanh.pop %v473
    %v490 = vtanh.pop %v474
    %v491 = vtanh.pop %v475
    %v492 = vtanh.pop %v476
    %v493 = vtanh.pop %v477
    %v494 = vtanh.pop %v478
    %v495 = vtanh.pop %v479
    %v496 = vtanh.pop %v480
    %v497 = vtanh.pop %v481
    %v498 = vtanh.pop %v482
    %v499 = vtanh.pop %v483
    %v500 = vtanh.pop %v484
    %v501 = vtanh.pop %v485
    %v502 = vadd.f32 %v486, 1.0
    %v503 = vadd.f32 %v487, 1.0
    %v504 = vadd.f32 %v488, 1.0
    %v505 = vadd.f32 %v489, 1.0
    %v506 = vadd.f32 %v490, 1.0
    %v507 = vadd.f32 %v491, 1.0
    %v508 = vadd.f32 %v492, 1.0
    %v509 = vadd.f32 %v493, 1.0
    %v510 = vadd.f32 %v494, 1.0
    %v511 = vadd.f32 %v495, 1.0
    %v512 = vadd.f32 %v496, 1.0
    %v513 = vadd.f32 %v497, 1.0
    %v514 = vadd.f32 %v498, 1.0
    %v515 = vadd.f32 %v499, 1.0
    %v516 = vadd.f32 %v500, 1.0
    %v517 = vadd.f32 %v501, 1.0
    %v518 = vmul.f32 %v502, 0.5
    %v519 = vmul.f32 %v503, 0.5
    %v520 = vmul.f32 %v504, 0.5
    %v521 = vmul.f32 %v505, 0.5
    %v522 = vmul.f32 %v506, 0.5
    %v523 = vmul.f32 %v507, 0.5
    %v524 = vmul.f32 %v508, 0.5
    %v525 = vmul.f32 %v509, 0.5
    %v526 = vmul.f32 %v510, 0.5
    %v527 = vmul.f32 %v511, 0.5
    %v528 = vmul.f32 %v512, 0.5
    %v529 = vmul.f32 %v513, 0.5
    %v530 = vmul.f32 %v514, 0.5
    %v531 = vmul.f32 %v515, 0.5
    %v532 = vmul.f32 %v516, 0.5
    %v533 = vmul.f32 %v517, 0.5
    %v534 = vmul.f32 %v340, %v518
    %v535 = vmul.f32 %v359, %v519
    %v536 = vmul.f32 %v378, %v520
    %v537 = vmul.f32 %v397, %v521
    %v538 = vmul.f32 %v342, %v522
    %v539 = vmul.f32 %v361, %v523
    %v540 = vmul.f32 %v380, %v524
    %v541 = vmul.f32 %v399, %v525
    %v542 = vmul.f32 %v345, %v526
    %v543 = vmul.f32 %v364, %v527
    %v544 = vmul.f32 %v383, %v528
    %v545 = vmul.f32 %v402, %v529
    %v546 = vmul.f32 %v347, %v530
    %v547 = vmul.f32 %v366, %v531
    %v548 = vmul.f32 %v385, %v532
    %v549 = vmul.f32 %v404, %v533
    %v550 = vmul.f32 %v534, %v193
    %v551 = vmul.f32 %v535, %v193
    %v552 = vmul.f32 %v536, %v212
    %v553 = vmul.f32 %v537, %v212
    %v554 = vmul.f32 %v538, %v198
    %v555 = vmul.f32 %v539, %v198
    %v556 = vmul.f32 %v540, %v216
    %v557 = vmul.f32 %v541, %v216
    %v558 = vmul.f32 %v542, %v203
    %v559 = vmul.f32 %v543, %v203
    %v560 = vmul.f32 %v544, %v220
    %v561 = vmul.f32 %v545, %v220
    %v562 = vmul.f32 %v546, %v208
    %v563 = vmul.f32 %v547, %v208
    %v564 = vmul.f32 %v548, %v224
    %v565 = vmul.f32 %v549, %v224
    %v566 = vadd.f32 %v550, %v229
    %v567 = vadd.f32 %v551, %v229
    %v568 = vadd.f32 %v552, %v248
    %v569 = vadd.f32 %v553, %v248
    %v570 = vadd.f32 %v554, %v234
    %v571 = vadd.f32 %v555, %v234
    %v572 = vadd.f32 %v556, %v252
    %v573 = vadd.f32 %v557, %v252
    %v574 = vadd.f32 %v558, %v239
    %v575 = vadd.f32 %v559, %v239
    %v576 = vadd.f32 %v560, %v256
    %v577 = vadd.f32 %v561, %v256
    %v578 = vadd.f32 %v562, %v244
    %v579 = vadd.f32 %v563, %v244
    %v580 = vadd.f32 %v564, %v260
    %v581 = vadd.f32 %v565, %v260
    %v582 = vld [vmem:[%s5] sm:$0x3]
    %v583 = vpack.c.bf16 %v570, %v566
    %v584 = vpack.c.bf16 %v571, %v567
    %v585 = vpack.c.bf16 %v572, %v568
    %v586 = vpack.c.bf16 %v573, %v569
    %v587 = vpack.c.bf16 %v578, %v574
    %v588 = vpack.c.bf16 %v579, %v575
    %v589 = vpack.c.bf16 %v580, %v576
    %v590 = vpack.c.bf16 %v581, %v577
    %v591 = vld [vmem:[%s6] sm:$0xf]
    %593 = vset.pattern.permute.xlu0 0
    %594 = vperm.xlu0 %593, %v591
    %v595 = vpop.permute.xlu0 %594
    %v598 = vsel %vm62, %v582, 0
    %600 = vmatpush.bf16.msra.mxu0 0
    %601 = vmatpush.bf16.msra.mxu0 0
    %602 = vmatpush.bf16.msra.mxu0 0
    %603 = vmatpush.bf16.msra.mxu0 0
    %604 = vmatpush.bf16.msra.mxu0 0
    %605 = vmatpush.bf16.msra.mxu0 0
    %606 = vmatpush.bf16.msra.mxu0 %v587
    %607 = vmatpush.bf16.msra.mxu0 %v583
    %608 = vmatmul.bf16.gmra.mxu0 %v598
    %v609 = vpop.f32.mrf.mxu0
    %v610 = vadd.f32 %v595, %v609
    %v611 = vpop.f32.mrf.mxu0
    %612 = vdwg.mxu0
    %613 = vmatpush.bf16.msra.mxu0 0
    %614 = vmatpush.bf16.msra.mxu0 0
    %615 = vmatpush.bf16.msra.mxu0 0
    %616 = vmatpush.bf16.msra.mxu0 0
    %617 = vmatpush.bf16.msra.mxu0 0
    %618 = vmatpush.bf16.msra.mxu0 0
    %619 = vmatpush.bf16.msra.mxu0 %v588
    %620 = vmatpush.bf16.msra.mxu0 %v584
    %621 = vmatmul.bf16.gmra.mxu0 %v598
    %v622 = vpop.f32.mrf.mxu0
    %v623 = vadd.f32 %v595, %v622
    %v624 = vpop.f32.mrf.mxu0
    %625 = vdwg.mxu0
    %626 = vmatpush.bf16.msra.mxu0 0
    %627 = vmatpush.bf16.msra.mxu0 0
    %628 = vmatpush.bf16.msra.mxu0 0
    %629 = vmatpush.bf16.msra.mxu0 0
    %630 = vmatpush.bf16.msra.mxu0 0
    %631 = vmatpush.bf16.msra.mxu0 0
    %632 = vmatpush.bf16.msra.mxu0 %v589
    %633 = vmatpush.bf16.msra.mxu0 %v585
    %634 = vmatmul.bf16.gmra.mxu0 %v598
    %v635 = vpop.f32.mrf.mxu0
    %v636 = vadd.f32 %v595, %v635
    %v637 = vpop.f32.mrf.mxu0
    %638 = vdwg.mxu0
    %639 = vmatpush.bf16.msra.mxu0 0
    %640 = vmatpush.bf16.msra.mxu0 0
    %641 = vmatpush.bf16.msra.mxu0 0
    %642 = vmatpush.bf16.msra.mxu0 0
    %643 = vmatpush.bf16.msra.mxu0 0
    %644 = vmatpush.bf16.msra.mxu0 0
    %645 = vmatpush.bf16.msra.mxu0 %v590
    %646 = vmatpush.bf16.msra.mxu0 %v586
    %647 = vmatmul.bf16.gmra.mxu0 %v598
    %v648 = vpop.f32.mrf.mxu0
    %v649 = vadd.f32 %v595, %v648
    %v650 = vpop.f32.mrf.mxu0
    %651 = vdwg.mxu0
    %v652 = vtanh.pop %v610
    %v653 = vtanh.pop %v623
    %v654 = vtanh.pop %v636
    %v655 = vtanh.pop %v649
    %v656 = vpack.c.bf16 %v653, %v652
    %v657 = vpack.c.bf16 %v655, %v654
    %v659 = vrot.slane %v656, 2
    %v662 = vsel %vm103, %v656, %v659
    %664 = vst [vmem:[%s7] sm:$0xf] %v662
    %v666 = vrot.slane %v657, 2
    %v669 = vsel %vm103, %v657, %v666
    %s671 = scalar_lea.vmem %s7, 4
    %672 = vst [vmem:[%s671] sm:$0xf] %v669
    // Predicated region
    $region38: #{text_unsupervised_translation_forward.1} parent=1 // pred_check
      _
    $region39: #{text_unsupervised_translation_forward.1} parent=1 // pred_check_branch
      %674 = sbr.rel (0) target = $region41
    $region40: #{text_unsupervised_translation_forward.1} parent=1 // pred_region
      _
    $region41: #{text_unsupervised_translation_forward.1} parent=1 // pred_fallthru
      _
    // Predicated region
    $region42: #{text_unsupervised_translation_forward.1} parent=1 // pred_check
      _
    $region43: #{text_unsupervised_translation_forward.1} parent=1 // pred_check_branch
      %676 = sbr.rel (0) target = $region45
    $region44: #{text_unsupervised_translation_forward.1} parent=1 // pred_region
      _
    $region45: #{text_unsupervised_translation_forward.1} parent=1 // pred_fallthru
      _
    %677 = vsyncpa [#allocation3], 1
    %678 = vsyncpa [#allocation5], 1

</llo_original>
